<compile_context>
chip_gen: v5e
topology: v5e:2x2
jax: 0.10.0
libtpu: 0.0.40
codegen_flags: <defaults>
</compile_context>

<pallas_src>
import functools

import jax
import jax.numpy as jnp
from jax.experimental import pallas as pl
from jax.experimental.pallas import tpu as pltpu


_LANE = 128
_MAX_COLS = 2048                          # lane-dense block width (multiple of 128)
_FALLBACK_BLOCK_BYTES = 4 * 1024 * 1024   # used if the hardware query is unavailable
_FALLBACK_VMEM_LIMIT = 32 * 1024 * 1024
_PIPELINE_MIN_BYTES = 1 * 1024 * 1024     # below this, extra grid steps are pure overhead
_MIN_PIPELINE_STEPS = 4                   # target >= ~4 row blocks for DMA/compute overlap


def _swish_kernel(x_ref, o_ref, *, b, compute_dtype):
    xf = x_ref[...].astype(compute_dtype)
    denom = 1.0 + jnp.exp(xf * (-b))
    if compute_dtype == jnp.float32:
        # Exact reciprocal + multiply (approx=True would use the EUP vrcp at ~1e-3 rel
        # error; the kernel is HBM-bound, so keep PyTorch semantics within f32 rounding).
        y = xf * pl.reciprocal(denom)
    else:
        # bf16 fast path (v7x): halves EUP/VALU work and vreg pressure vs f32 compute.
        y = xf / denom
    o_ref[...] = y.astype(o_ref.dtype)


def _tpu_tuning():
    """(block_bytes, vmem_limit_bytes, vmem_capacity_or_None) derived from the chip."""
    try:
        cap = int(pltpu.get_tpu_info().vmem_capacity_bytes)
    except Exception:
        # Unknown backend / older jax: stay with known-safe conservative defaults.
        return _FALLBACK_BLOCK_BYTES, _FALLBACK_VMEM_LIMIT, None
    # v5e/v6e (128 MiB physical) -> 64 MiB limit; v7x (64 MiB physical) -> 48 MiB limit.
    vmem_limit = min(64 * 1024 * 1024, (cap * 3) // 4)
    # 8 MiB blocks: double-buffered in+out = 32 MiB, always <= limit with headroom.
    block_bytes = min(8 * 1024 * 1024, vmem_limit // 6)
    return block_bytes, vmem_limit, cap


def _sublane(itemsize):
    # Sublane packing: 8 rows for f32, 16 for bf16, 32 for int8/fp8.
    return max(8, 32 // itemsize)


def _row_block(rows, bcols, itemsize, block_bytes, total_bytes):
    """Rows per block: a multiple of the sublane pack, or the full row extent."""
    sub = _sublane(itemsize)
    if rows <= sub:
        return rows                                    # full extent is always legal
    t = max(sub, (block_bytes // (bcols * itemsize)) // sub * sub)
    if total_bytes > _PIPELINE_MIN_BYTES:
        # Guarantee >= ~_MIN_PIPELINE_STEPS grid steps so in-DMA / compute / out-DMA
        # overlap; a single-block grid serializes them (up to ~2x slower on 1-8 MiB).
        cap = max(sub, (rows // _MIN_PIPELINE_STEPS) // sub * sub)
        t = min(t, cap)
    return rows if t >= rows else t


def _choose_layout(shape, itemsize, block_bytes):
    """Return (rows, cols, brows, bcols) for a free (metadata-only) 2-D view of x."""
    n = 1
    for d in shape:
        n *= d
    total_bytes = n * itemsize

    if n % _LANE == 0:
        # Lane-dense zero-copy path: largest multiple of 128 dividing n, capped.
        cols = _LANE
        c = 2 * _LANE
        limit = min(_MAX_COLS, n)
        while c <= limit:
            if n % c == 0:
                cols = c
            c += _LANE
        rows = n // cols
        bcols = cols
    else:
        # Ragged path: keep a suffix of the original dims as the lane axis (still a free
        # reshape).  Boundary blocks are masked by Pallas, so no jnp.pad / post-slice.
        cols = shape[-1] if shape else 1
        for d in reversed(shape[:-1]):
            if cols * d > _MAX_COLS:
                break
            cols *= d
        cols = max(cols, 1)
        rows = n // cols
        bcols = cols if cols <= _MAX_COLS else _MAX_COLS   # _MAX_COLS % 128 == 0

    brows = _row_block(rows, bcols, itemsize, block_bytes, total_bytes)
    return rows, cols, brows, bcols


def swish(x: jax.Array, b: float = 1.0) -> jax.Array:
    """Swish / SiLU with slope `b`: x / (1 + exp(-b*x)). Matches the PyTorch module.

    Note: `b` is a fixed constructor constant in the PyTorch module, so it is baked in
    statically (each distinct b recompiles).
    TODO(synk): if beta ever becomes a learnable parameter, pass it as an SMEM scalar
    and add a custom_vjp (swish' = sig + b*x*sig*(1-sig)) for training.
    """
    orig_shape = x.shape
    orig_dtype = x.dtype
    n = x.size
    if n == 0:
        return x
    itemsize = jnp.dtype(orig_dtype).itemsize

    block_bytes, vmem_limit, vmem_cap = _tpu_tuning()
    rows, cols, brows, bcols = _choose_layout(orig_shape, itemsize, block_bytes)

    # f32 compute everywhere by default (and always on v5e, which lacks bf16 VPU/EUP);
    # bf16 compute for bf16 inputs on v7x-class chips (identified by <=64 MiB VMEM).
    compute_dtype = jnp.float32
    if orig_dtype == jnp.bfloat16 and vmem_cap is not None and vmem_cap <= 64 * 1024 * 1024:
        compute_dtype = jnp.bfloat16

    x2d = x.reshape(rows, cols)                  # free: row-major metadata reshape
    grid = (pl.cdiv(rows, brows), pl.cdiv(cols, bcols))

    # TODO(synk): when used inside a larger pipeline, fuse this activation into the
    # producer (matmul/conv epilogue) or enable allow_input_fusion so XLA folds the
    # producer into the input DMA — that removes a full HBM round trip and dwarfs any
    # in-kernel tuning.
    out2d = pl.pallas_call(
        functools.partial(_swish_kernel, b=float(b), compute_dtype=compute_dtype),
        out_shape=jax.ShapeDtypeStruct((rows, cols), orig_dtype),
        grid_spec=pltpu.PrefetchScalarGridSpec(
            num_scalar_prefetch=0,
            grid=grid,
            in_specs=[pl.BlockSpec((brows, bcols), lambda i, j: (i, j))],
            out_specs=pl.BlockSpec((brows, bcols), lambda i, j: (i, j)),
        ),
        compiler_params=pltpu.CompilerParams(
            # TODO(synk): on v7x, profile pltpu.CORE_PARALLEL on the row axis (2 TCs)
            # and pipeline_mode=pl.Buffered(3); keep only if one TC's DMA streams
            # can't already saturate the 3.2 TB/s HBM roofline.
            dimension_semantics=("parallel", "parallel"),
            vmem_limit_bytes=vmem_limit,
        ),
        cost_estimate=pl.CostEstimate(
            flops=4 * n,
            transcendentals=n,
            bytes_accessed=2 * n * itemsize,
        ),
    )(x2d)

    return out2d.reshape(orig_shape)             # free reshape back, no extra HBM pass


if __name__ == "__main__":
    key = jax.random.PRNGKey(0)
    b = 1.0

    # NCHW input, as the PyTorch module would see (n % 128 == 0 -> lane-dense path).
    x = jax.random.normal(key, (2, 4, 16, 16), dtype=jnp.float32)
    y = jax.block_until_ready(swish(x, b=b))
    y_ref = x / (1.0 + jnp.exp(-b * x))
    assert y.shape == x.shape and y.dtype == x.dtype
    assert jnp.allclose(y, y_ref, atol=1e-6, rtol=1e-5), "mismatch vs reference (aligned)"

    # Ragged size exercising the pad-free, boundary-masked path.
    x2 = jax.random.normal(jax.random.PRNGKey(1), (3, 5, 7), dtype=jnp.float32)
    y2 = jax.block_until_ready(swish(x2, b=1.5))
    y2_ref = x2 / (1.0 + jnp.exp(-1.5 * x2))
    assert y2.shape == x2.shape and y2.dtype == x2.dtype
    assert jnp.allclose(y2, y2_ref, atol=1e-6, rtol=1e-5), "mismatch vs reference (ragged)"

    # bf16 input (takes the bf16 compute path on v7x-class chips, f32 elsewhere).
    x3 = jax.random.normal(jax.random.PRNGKey(2), (4, 8, 32), dtype=jnp.bfloat16)
    y3 = jax.block_until_ready(swish(x3, b=b))
    x3f = x3.astype(jnp.float32)
    y3_ref = (x3f / (1.0 + jnp.exp(-b * x3f))).astype(jnp.bfloat16)
    assert y3.shape == x3.shape and y3.dtype == x3.dtype
    assert jnp.allclose(y3.astype(jnp.float32), y3_ref.astype(jnp.float32),
                        atol=2e-2, rtol=2e-2), "mismatch vs reference (bf16)"

    print("KERNEL_OK")
</pallas_src>

<mosaic_0001>
module attributes {stable_mosaic.version = 11 : i64} {
  func.func @_swish_kernel(%arg0: i32, %arg1: i32, %arg2: memref<1x2048xf32, #tpu.memory_space<vmem>>, %arg3: memref<1x2048xf32, #tpu.memory_space<vmem>>) attributes {dimension_semantics = [#tpu.dimension_semantics<parallel>, #tpu.dimension_semantics<parallel>], iteration_bounds = array<i64: 1, 1>, scalar_prefetch = 0 : i64, scratch_operands = 0 : i64, tpu.core_type = #tpu.core_type<tc>, window_params = [{transform_indices = @transform_0, window_bounds = array<i64: 1, 2048>}, {transform_indices = @transform_1, window_bounds = array<i64: 1, 2048>}]} {
    %c0 = arith.constant 0 : index
    %c0_0 = arith.constant 0 : index
    %0 = vector.load %arg2[%c0, %c0_0] : memref<1x2048xf32, #tpu.memory_space<vmem>>, vector<1x2048xf32>
    %cst = arith.constant -1.000000e+00 : f32
    %1 = vector.broadcast %cst : f32 to vector<1x2048xf32>
    %2 = arith.mulf %0, %1 : vector<1x2048xf32>
    %3 = math.exp %2 : vector<1x2048xf32>
    %cst_1 = arith.constant 1.000000e+00 : f32
    %4 = vector.broadcast %cst_1 : f32 to vector<1x2048xf32>
    %5 = arith.addf %4, %3 : vector<1x2048xf32>
    %6 = tpu.reciprocal %5 : vector<1x2048xf32> -> vector<1x2048xf32>
    %7 = arith.mulf %0, %6 : vector<1x2048xf32>
    %c0_2 = arith.constant 0 : index
    %c0_3 = arith.constant 0 : index
    %8 = vector.load %arg3[%c0_2, %c0_3] : memref<1x2048xf32, #tpu.memory_space<vmem>>, vector<1x2048xf32>
    tpu.vector_store %arg3[%c0_2, %c0_3], %7 {strides = array<i32>} : memref<1x2048xf32, #tpu.memory_space<vmem>>, vector<1x2048xf32>,
    return
  }
  func.func @transform_0(%arg0: i32, %arg1: i32) -> (i32, i32) {
    %c0_i32 = arith.constant 0 : i32
    return %arg0, %arg1 : i32, i32
  }
  func.func @transform_1(%arg0: i32, %arg1: i32) -> (i32, i32) {
    %c0_i32 = arith.constant 0 : i32
    return %arg0, %arg1 : i32, i32
  }
}

</mosaic_0001>

<llo_original>
// kernel: tpu_custom_call.1
$region0: #{tpu_custom_call.1}
  #allocation0 [shape = 'u32[]', space=smem, size = 0x4, offset = 0x4, fixed_abs, tag = 'smem constant byte address 0x4 - core index']
  #allocation1 [shape = 'u32[72,128]{1,0:T(1,128)}', space=vmem, size = 0x9000, scoped, tag = 'internal scratch']
  %s0 = inlined_call_operand.hbm [shape: f32[1,2048], index: 0, kind: input, shape index: {}]
  %s1 = inlined_call_operand.hbm [shape: f32[1,2048], index: 1, kind: output, shape index: {}]
  %s2 = sld [smem:[#allocation0]]
  $region18: #{tpu_custom_call.1} parent=0
    _
  %s4 = ssub.s32 1, %s2
  %s5 = scalar_select 0, %s4, %s2
  $region1: #{tpu_custom_call.1} parent=0
    #allocation2 [shape = 'u8[8192]{0}', space=vmem, size = 0x2000, scoped, tag = 'input window, operand 0, single buffered']
    #allocation3 [shape = 's32[1]{0}', space=sflag, size = 0x4, scoped, tag = 'scoped memory for tpu_custom_call.1']
    #allocation4 [shape = 's32[1]{0}', space=sflag, size = 0x4, scoped, tag = 'scoped memory for tpu_custom_call.1']
    #allocation5 [shape = 'u8[8192]{0}', space=vmem, size = 0x2000, scoped, tag = 'output window, operand 0, single buffered']
    %6 = vsyncpa [#allocation3], 0
    %7 = vsyncpa [#allocation4], 0
    // Predicated region
    $region2: #{tpu_custom_call.1} parent=1 // pred_check
      _
    $region3: #{tpu_custom_call.1} parent=1 // pred_check_branch
      %9 = sbr.rel (0) target = $region5
    $region4: #{tpu_custom_call.1} parent=1 // pred_region
      %11 = vsyncadd [#allocation3], 0
      %s13 = sshll.u32 %s0, 4
      %s14 = int_to_ptr.hbm [resolvable:$true] %s13
      %s15 = sshll.u32 [#allocation2], 4
      %s16 = int_to_ptr.vmem [resolvable:$true] %s15
      %18 = dma.hbm_to_vmem [thread:$0]  %s14, 256, %s16, [#allocation3]
    $region5: #{tpu_custom_call.1} parent=1 // pred_fallthru
      _
    // Predicated region
    $region6: #{tpu_custom_call.1} parent=1 // pred_check
      _
    $region7: #{tpu_custom_call.1} parent=1 // pred_check_branch
      %20 = sbr.rel (0) target = $region9
    $region8: #{tpu_custom_call.1} parent=1 // pred_region
      %22 = dma.done [#allocation3], 256
    $region9: #{tpu_custom_call.1} parent=1 // pred_fallthru
      _
    %v23 = vld [vmem:[#allocation2] sm:$0xff]
    %v24 = vld [vmem:[#allocation2 + $0x8] sm:$0xff]
    %v25 = vmul.f32 %v23, -1.0
    %v26 = vmul.f32 %v24, -1.0
    %v27 = vmul.f32 %v25, 1.442695
    %v28 = vpow.pop %v27
    %v29 = vmul.f32 %v26, 1.442695
    %v30 = vpow.pop %v29
    %v31 = vadd.f32 %v28, 1.0
    %v32 = vadd.f32 %v30, 1.0
    %v33 = vrcp.pop %v31
    %v34 = vmul.f32 %v31, %v33
    %v35 = vsub.f32 1.0, %v34
    %v36 = vmul.f32 %v33, %v35
    %v37 = vadd.f32 %v33, %v36
    %vm38 = vweird.f32 %v31
    %vm39 = vweird.f32 %v33
    %vm40 = vmor %vm38, %vm39
    %v41 = vsel %vm40, %v33, %v37
    %v42 = vand.u32 2147483647, %v31
    %vm43 = vcmp.eq.f32.partialorder %v42, 8.507059e+37
    %v44 = vand.u32 %v31, 2147483648
    %v45 = vor.u32 1.1754944e-38, %v44
    %v46 = vsel %vm43, %v45, %v41
    %v47 = vrcp.pop %v32
    %v48 = vmul.f32 %v32, %v47
    %v49 = vsub.f32 1.0, %v48
    %v50 = vmul.f32 %v47, %v49
    %v51 = vadd.f32 %v47, %v50
    %vm52 = vweird.f32 %v32
    %vm53 = vweird.f32 %v47
    %vm54 = vmor %vm52, %vm53
    %v55 = vsel %vm54, %v47, %v51
    %v56 = vand.u32 2147483647, %v32
    %vm57 = vcmp.eq.f32.partialorder %v56, 8.507059e+37
    %v58 = vand.u32 %v32, 2147483648
    %v59 = vor.u32 1.1754944e-38, %v58
    %v60 = vsel %vm57, %v59, %v55
    %v61 = vmul.f32 %v23, %v46
    %v62 = vmul.f32 %v24, %v60
    %63 = vst [vmem:[#allocation5] sm:$0xff] %v61
    %64 = vst [vmem:[#allocation5 + $0x8] sm:$0xff] %v62
    // Predicated region
    $region10: #{tpu_custom_call.1} parent=1 // pred_check
      _
    $region11: #{tpu_custom_call.1} parent=1 // pred_check_branch
      %66 = sbr.rel (0) target = $region13
    $region12: #{tpu_custom_call.1} parent=1 // pred_region
      %68 = vsyncadd [#allocation4], 0
      %s70 = sshll.u32 [#allocation5], 4
      %s71 = int_to_ptr.vmem [resolvable:$true] %s70
      %s72 = sshll.u32 %s1, 4
      %s73 = int_to_ptr.hbm [resolvable:$true] %s72
      %75 = dma.vmem_to_hbm [thread:$0]  %s71, 256, %s73, [#allocation4]
    $region13: #{tpu_custom_call.1} parent=1 // pred_fallthru
      _
    // Predicated region
    $region14: #{tpu_custom_call.1} parent=1 // pred_check
      _
    $region15: #{tpu_custom_call.1} parent=1 // pred_check_branch
      %77 = sbr.rel (0) target = $region17
    $region16: #{tpu_custom_call.1} parent=1 // pred_region
      %79 = dma.done [#allocation4], 256
    $region17: #{tpu_custom_call.1} parent=1 // pred_fallthru
      _
    %80 = vsyncpa [#allocation3], 1
    %81 = vsyncpa [#allocation4], 1

</llo_original>
